<compile_context>
chip_gen: v7x
topology: tpu7x:2x2x1
jax: 0.10.0
libtpu: 0.0.40
codegen_flags: <defaults>
</compile_context>

<pallas_src>
import jax
import jax.numpy as jnp
from jax.experimental import pallas as pl
from jax.experimental.pallas import tpu as pltpu

_LANES = 128      # vreg lane width
_SUBLANES = 8     # f32 vreg sublanes


def logistic_kernel(w_ref, b_ref, x_ref, o_ref):
    # w_ref, b_ref: (1,) f32 scalars resident in SMEM (scalar path).
    # x_ref, o_ref: (tile_rows, 128) lane-dense VMEM tiles.
    w = w_ref[0]
    b = b_ref[0]
    z = x_ref[...].astype(jnp.float32) * w + b

    # Exact, numerically stable sigmoid. The kernel is HBM-bandwidth bound, so the extra
    # VPU/EUP work (abs, exp, one exact divide, one select) rides entirely in slack.
    e = jnp.exp(-jnp.abs(z))          # EUP transcendental; in (0, 1], never overflows
    recip = 1.0 / (1.0 + e)           # exact divide (free: DMA-bound)
    sig = jnp.where(z >= 0, recip, e * recip)

    o_ref[...] = sig.astype(o_ref.dtype)


def logistic_regression(x, w, b, *, tile_rows=4096):
    """sigmoid(x @ w.T + b) with x: (N, 1), w: (1, 1), b: (1, 1)."""
    n, f = x.shape
    assert f == 1 and w.shape == (1, 1) and b.shape == (1, 1)

    # ---- lane-dense view: (N, 1) -> (rows, 128) ----
    rows_needed = max(int(pl.cdiv(n, _LANES)), 1)
    # Tile rows: multiple of 8 (f32 sublanes), no larger than the padded row count.
    tr = min(tile_rows, int(pl.cdiv(rows_needed, _SUBLANES)) * _SUBLANES)
    tr = max(_SUBLANES, (tr // _SUBLANES) * _SUBLANES)
    rows = int(pl.cdiv(rows_needed, tr)) * tr
    grid_n = rows // tr

    pad = rows * _LANES - n
    if pad == 0:
        # Free bitcast: no extra HBM round trip on either side of the pallas_call.
        x2d = x.reshape(rows, _LANES)
    else:
        # TODO(synk): for very large ragged N, mask the tail in-kernel (N via SMEM +
        # masked pltpu.store on the last grid step) instead of padding/slicing in HBM.
        x2d = jnp.pad(x.reshape(-1), (0, pad)).reshape(rows, _LANES)

    # Scalar parameters -> SMEM (read on the scalar path inside the kernel).
    w_s = w.reshape(1).astype(jnp.float32)
    b_s = b.reshape(1).astype(jnp.float32)

    y2d = pl.pallas_call(
        logistic_kernel,
        out_shape=jax.ShapeDtypeStruct((rows, _LANES), x.dtype),
        grid_spec=pltpu.PrefetchScalarGridSpec(
            num_scalar_prefetch=0,
            grid=(grid_n,),
            in_specs=[
                pl.BlockSpec(memory_space=pltpu.MemorySpace.SMEM),  # w (1,)
                pl.BlockSpec(memory_space=pltpu.MemorySpace.SMEM),  # b (1,)
                pl.BlockSpec((tr, _LANES), lambda i: (i, 0)),       # x tile
            ],
            out_specs=pl.BlockSpec((tr, _LANES), lambda i: (i, 0)),
        ),
        compiler_params=pltpu.CompilerParams(
            dimension_semantics=("parallel",),  # independent row tiles -> megacore-shardable
        ),
    )(w_s, b_s, x2d)

    if pad == 0:
        return y2d.reshape(n, 1)
    # Strip padding and restore the (N, 1) PyTorch layout (only for ragged N).
    return y2d.reshape(-1)[:n].reshape(n, 1)


if __name__ == "__main__":
    key = jax.random.PRNGKey(0)
    kx, kw, kb = jax.random.split(key, 3)

    # Deterministic "Linear(1, 1)" parameters (PyTorch inits U(-1, 1) here).
    w = jax.random.uniform(kw, (1, 1), jnp.float32, minval=-1.0, maxval=1.0)
    b = jax.random.uniform(kb, (1, 1), jnp.float32, minval=-1.0, maxval=1.0)

    # Small batch of scalar features, including the reference input 4.0.
    x = jax.random.normal(kx, (8, 1), jnp.float32)
    x = x.at[0, 0].set(4.0)

    y = logistic_regression(x, w, b)
    jax.block_until_ready(y)

    # Reference check in plain JAX (exact sigmoid in-kernel -> tight tolerance).
    y_ref = jax.nn.sigmoid(x @ w.T + b[0])
    assert y.shape == (8, 1)
    assert jnp.allclose(y, y_ref, atol=1e-5, rtol=1e-5), (y, y_ref)
    print("KERNEL_OK")
</pallas_src>

<mosaic_0001>
module attributes {stable_mosaic.version = 11 : i64} {
  func.func @logistic_kernel(%arg0: i32, %arg1: memref<1xf32, #tpu.memory_space<smem>>, %arg2: memref<1xf32, #tpu.memory_space<smem>>, %arg3: memref<8x128xf32, #tpu.memory_space<vmem>>, %arg4: memref<8x128xf32, #tpu.memory_space<vmem>>) attributes {dimension_semantics = [#tpu.dimension_semantics<parallel>], iteration_bounds = array<i64: 1>, scalar_prefetch = 0 : i64, scratch_operands = 0 : i64, tpu.core_type = #tpu.core_type<tc>, window_params = [{transform_indices = @transform_0, window_bounds = array<i64: 1>}, {transform_indices = @transform_1, window_bounds = array<i64: 1>}, {transform_indices = @transform_2, window_bounds = array<i64: 8, 128>}, {transform_indices = @transform_3, window_bounds = array<i64: 8, 128>}]} {
    %c0 = arith.constant 0 : index
    %0 = memref.load %arg1[%c0] : memref<1xf32, #tpu.memory_space<smem>>
    %c0_0 = arith.constant 0 : index
    %1 = memref.load %arg2[%c0_0] : memref<1xf32, #tpu.memory_space<smem>>
    %c0_1 = arith.constant 0 : index
    %c0_2 = arith.constant 0 : index
    %2 = vector.load %arg3[%c0_1, %c0_2] : memref<8x128xf32, #tpu.memory_space<vmem>>, vector<8x128xf32>
    %3 = vector.broadcast %0 : f32 to vector<8x128xf32>
    %4 = arith.mulf %2, %3 : vector<8x128xf32>
    %5 = vector.broadcast %1 : f32 to vector<8x128xf32>
    %6 = arith.addf %4, %5 : vector<8x128xf32>
    %7 = math.absf %6 : vector<8x128xf32>
    %cst = arith.constant 0.000000e+00 : f32
    %8 = vector.broadcast %cst : f32 to vector<8x128xf32>
    %9 = arith.subf %8, %7 : vector<8x128xf32>
    %10 = math.exp %9 : vector<8x128xf32>
    %cst_3 = arith.constant 1.000000e+00 : f32
    %11 = vector.broadcast %cst_3 : f32 to vector<8x128xf32>
    %12 = arith.addf %11, %10 : vector<8x128xf32>
    %cst_4 = arith.constant 1.000000e+00 : f32
    %13 = vector.broadcast %cst_4 : f32 to vector<8x128xf32>
    %14 = arith.divf %13, %12 : vector<8x128xf32>
    %cst_5 = arith.constant 0.000000e+00 : f32
    %15 = vector.broadcast %cst_5 : f32 to vector<8x128xf32>
    %16 = arith.cmpf oge, %6, %15 : vector<8x128xf32>
    %17 = arith.mulf %10, %14 : vector<8x128xf32>
    %18 = arith.select %16, %14, %17 : vector<8x128xi1>, vector<8x128xf32>
    %c0_6 = arith.constant 0 : index
    %c0_7 = arith.constant 0 : index
    %19 = vector.load %arg4[%c0_6, %c0_7] : memref<8x128xf32, #tpu.memory_space<vmem>>, vector<8x128xf32>
    tpu.vector_store %arg4[%c0_6, %c0_7], %18 {strides = array<i32>} : memref<8x128xf32, #tpu.memory_space<vmem>>, vector<8x128xf32>,
    return
  }
  func.func @transform_0(%arg0: i32) -> i32 {
    %c0_i32 = arith.constant 0 : i32
    %c0_i32_0 = arith.constant 0 : i32
    return %c0_i32 : i32
  }
  func.func @transform_1(%arg0: i32) -> i32 {
    %c0_i32 = arith.constant 0 : i32
    %c0_i32_0 = arith.constant 0 : i32
    return %c0_i32 : i32
  }
  func.func @transform_2(%arg0: i32) -> (i32, i32) {
    %c0_i32 = arith.constant 0 : i32
    %c0_i32_0 = arith.constant 0 : i32
    return %arg0, %c0_i32 : i32, i32
  }
  func.func @transform_3(%arg0: i32) -> (i32, i32) {
    %c0_i32 = arith.constant 0 : i32
    %c0_i32_0 = arith.constant 0 : i32
    return %arg0, %c0_i32 : i32, i32
  }
}

</mosaic_0001>

<llo_original>
// kernel: tpu_custom_call.1
$region0: #{tpu_custom_call.1}
  #allocation0 [shape = 'u32[]', space=smem, size = 0x4, offset = 0x4, fixed_abs, tag = 'smem constant byte address 0x4 - core index']
  #allocation1 [shape = 'u32[144,128]{1,0:T(1,128)}', space=vmem, size = 0x12000, scoped, tag = 'internal scratch']
  #allocation2 [shape = 'f32[1]{0:T(128)S(6)}', space=smem, size = 0x200, scoped, tag = 'scoped memory for tpu_custom_call.1']
  #allocation3 [shape = 'f32[1]{0:T(128)S(6)}', space=smem, size = 0x200, scoped, tag = 'scoped memory for tpu_custom_call.1']
  %s0 = inlined_call_operand.<no memory space> [shape: f32[1], index: 0, kind: input, shape index: {}]
  %s1 = inlined_call_operand.<no memory space> [shape: f32[1], index: 1, kind: input, shape index: {}]
  %s2 = inlined_call_operand.hbm [shape: f32[8,128], index: 2, kind: input, shape index: {}]
  %s3 = inlined_call_operand.hbm [shape: f32[8,128], index: 3, kind: output, shape index: {}]
  %s4 = sld [smem:[#allocation0]]
  $region26: #{tpu_custom_call.1} parent=0
    _
  %s6 = ssub.s32 1, %s4
  %s7 = scalar_select 0, %s6, %s4
  %8 = sst [smem:[#allocation2]] %s0
  %9 = sst [smem:[#allocation3]] %s1
  $region1: #{tpu_custom_call.1} parent=0
    #allocation4 [shape = 'u8[4096]{0}', space=vmem, size = 0x1000, scoped, tag = 'input window, operand 2, single buffered']
    #allocation5 [shape = 's32[1]{0}', space=sflag, size = 0x4, scoped, tag = 'scoped memory for tpu_custom_call.1']
    #allocation6 [shape = 's32[1]{0}', space=sflag, size = 0x4, scoped, tag = 'scoped memory for tpu_custom_call.1']
    #allocation7 [shape = 'u8[4096]{0}', space=vmem, size = 0x1000, scoped, tag = 'output window, operand 0, single buffered']
    %10 = vsyncpa [#allocation5], 0
    %11 = vsyncpa [#allocation6], 0
    // Predicated region
    $region2: #{tpu_custom_call.1} parent=1 // pred_check
      _
    $region3: #{tpu_custom_call.1} parent=1 // pred_check_branch
      %13 = sbr.rel (0) target = $region5
    $region4: #{tpu_custom_call.1} parent=1 // pred_region
      _
    $region5: #{tpu_custom_call.1} parent=1 // pred_fallthru
      _
    // Predicated region
    $region6: #{tpu_custom_call.1} parent=1 // pred_check
      _
    $region7: #{tpu_custom_call.1} parent=1 // pred_check_branch
      %15 = sbr.rel (0) target = $region9
    $region8: #{tpu_custom_call.1} parent=1 // pred_region
      _
    $region9: #{tpu_custom_call.1} parent=1 // pred_fallthru
      _
    // Predicated region
    $region10: #{tpu_custom_call.1} parent=1 // pred_check
      _
    $region11: #{tpu_custom_call.1} parent=1 // pred_check_branch
      %17 = sbr.rel (0) target = $region13
    $region12: #{tpu_custom_call.1} parent=1 // pred_region
      %s19 = ssub.s32 128, 128
      %20 = vsyncadd [#allocation5], %s19
      %s22 = sshll.u32 [#allocation4], 4
      %s23 = int_to_ptr.vmem [resolvable:$true] %s22
      %25 = dma.hbm_to_vmem [thread:$0]  %s2, 128, %s23, [#allocation5]
    $region13: #{tpu_custom_call.1} parent=1 // pred_fallthru
      _
    // Predicated region
    $region14: #{tpu_custom_call.1} parent=1 // pred_check
      _
    $region15: #{tpu_custom_call.1} parent=1 // pred_check_branch
      %27 = sbr.rel (0) target = $region17
    $region16: #{tpu_custom_call.1} parent=1 // pred_region
      %28 = dma.done [#allocation5], 128
    $region17: #{tpu_custom_call.1} parent=1 // pred_fallthru
      _
    %s29 = sld [smem:[#allocation2]]
    %s30 = sld [smem:[#allocation3]]
    %v31 = vld [vmem:[#allocation4] sm:$0xff]
    %v32 = vstv %s29
    %v33 = vmul.f32 %v31, %v32
    %v34 = vstv %s30
    %v35 = vadd.f32 %v33, %v34
    %v36 = vand.u32 2147483647, %v35
    %v37 = vsub.f32 0.0, %v36
    %v38 = vmul.f32 %v37, 1.442695
    %v39 = vpow.pop %v38
    %v40 = vadd.f32 %v39, 1.0
    %v41 = vrcp.pop %v40
    %v42 = vmul.f32 1.0, %v41
    %vm43 = vcmp.ge.f32.partialorder %v35, 0.0
    %v44 = vmul.f32 %v39, %v42
    %v45 = vsel %vm43, %v42, %v44
    %46 = vst [vmem:[#allocation7] sm:$0xff] %v45
    // Predicated region
    $region18: #{tpu_custom_call.1} parent=1 // pred_check
      _
    $region19: #{tpu_custom_call.1} parent=1 // pred_check_branch
      %48 = sbr.rel (0) target = $region21
    $region20: #{tpu_custom_call.1} parent=1 // pred_region
      %s50 = ssub.s32 128, 128
      %51 = vsyncadd [#allocation6], %s50
      %s53 = sshll.u32 [#allocation7], 4
      %s54 = int_to_ptr.vmem [resolvable:$true] %s53
      %56 = dma.vmem_to_hbm [thread:$0]  %s54, 128, %s3, [#allocation6]
    $region21: #{tpu_custom_call.1} parent=1 // pred_fallthru
      _
    // Predicated region
    $region22: #{tpu_custom_call.1} parent=1 // pred_check
      _
    $region23: #{tpu_custom_call.1} parent=1 // pred_check_branch
      %58 = sbr.rel (0) target = $region25
    $region24: #{tpu_custom_call.1} parent=1 // pred_region
      %59 = dma.done [#allocation6], 128
    $region25: #{tpu_custom_call.1} parent=1 // pred_fallthru
      _
    %60 = vsyncpa [#allocation5], 1
    %61 = vsyncpa [#allocation6], 1

</llo_original>
